<compile_context>
chip_gen: v7x
topology: tpu7x:2x2x1
jax: 0.10.0
libtpu: 0.0.40
codegen_flags: <defaults>
</compile_context>

<pallas_src>
import jax
import jax.numpy as jnp
from jax.experimental import pallas as pl
from jax.experimental.pallas import tpu as pltpu


def encoder_kernel(src_ref, w_emb_ref, b_emb_ref, w_igo_ref, b_igo_ref, hc_ref):
    # ---- Linear embedding + ReLU (+ identity dropout) ----
    x = src_ref[...]                                              # [B, D_in] bf16
    emb = jnp.dot(x, w_emb_ref[...],
                  preferred_element_type=jnp.float32) + b_emb_ref[...]
    emb = jnp.maximum(emb, 0.0)                                   # f32
    # TODO(synk): nn.Dropout(0.5) is identity in eval mode; training-mode RNG
    #             masking (pltpu.prng_random_bits + 1/(1-p) scale) not applied.

    # ---- Single LSTM step with zero initial hidden/cell state ----
    # Only the (i, g, o) gate columns are present; biases pre-fused in wrapper.
    gates = jnp.dot(emb.astype(w_igo_ref.dtype), w_igo_ref[...],
                    preferred_element_type=jnp.float32)           # [B, 3H] f32
    gates = gates + b_igo_ref[...]

    H = hc_ref.shape[-1] // 2
    # Two whole-tile EUP ops, then cheap lane slices (instead of 4 sliced EUP calls).
    sg = jax.nn.sigmoid(gates)
    th = jnp.tanh(gates)
    i_g = sg[:, 0 * H:1 * H]
    g_g = th[:, 1 * H:2 * H]
    o_g = sg[:, 2 * H:3 * H]

    c = i_g * g_g                       # f_gate * c0 == 0
    h = o_g * jnp.tanh(c)

    # Single lane-dense store: [h | c] -> [B, 2H]
    hc_ref[...] = jnp.concatenate([h, c], axis=-1)


def encoder_forward(src, w_emb, b_emb, w_ih, b_ih, b_hh, hid_dim):
    """src: [B, input_dim]  ->  (hidden, cell), each [1, B, hid_dim] (f32)."""
    B = src.shape[0]
    H = hid_dim

    # --- wrapper-side plumbing (traced once under jit; pure layout prep) ---
    # 1) fold the two LSTM biases
    b_gates = b_ih + b_hh                                          # [1, 4H]
    # 2) drop dead forget-gate columns, keep (i, g, o) order
    w_igo = jnp.concatenate(
        [w_ih[:, 0 * H:1 * H], w_ih[:, 2 * H:3 * H], w_ih[:, 3 * H:4 * H]], axis=1)
    b_igo = jnp.concatenate(
        [b_gates[:, 0 * H:1 * H], b_gates[:, 2 * H:3 * H], b_gates[:, 3 * H:4 * H]],
        axis=1)
    # 3) bf16 matmul inputs, f32 accumulation inside the kernel
    src_bf = src.astype(jnp.bfloat16)
    w_emb_bf = w_emb.astype(jnp.bfloat16)
    w_igo_bf = w_igo.astype(jnp.bfloat16)

    # TODO(synk): if this encoder is invoked per-step/per-sequence, stack those
    #             invocations along the batch axis into ONE pallas_call; at these
    #             shapes the kernel is entirely launch/DMA-overhead bound.

    vmem = pl.BlockSpec(memory_space=pltpu.VMEM)   # whole arrays, single grid point
    hc = pl.pallas_call(
        encoder_kernel,
        out_shape=jax.ShapeDtypeStruct((B, 2 * H), jnp.float32),
        in_specs=[vmem] * 5,
        out_specs=vmem,
    )(src_bf, w_emb_bf, b_emb, w_igo_bf, b_igo)

    hidden = hc[:, :H]
    cell = hc[:, H:]
    # match PyTorch LSTM output shape [num_layers=1, batch, hid_dim]
    return hidden[None, :, :], cell[None, :, :]


if __name__ == "__main__":
    # Small shapes consistent with the module's forward
    batch = 2
    input_dim = 8
    emb_dim = 32
    hid_dim = 32

    key = jax.random.PRNGKey(0)
    k_src, k_we, k_be, k_wih, k_bih, k_bhh = jax.random.split(key, 6)

    src = jax.random.normal(k_src, (batch, input_dim), dtype=jnp.float32)

    # Deterministic parameter init (stored as [in, out] / [1, out] for the kernel)
    w_emb = 0.1 * jax.random.normal(k_we, (input_dim, emb_dim), dtype=jnp.float32)
    b_emb = 0.1 * jax.random.normal(k_be, (1, emb_dim), dtype=jnp.float32)
    w_ih = 0.1 * jax.random.normal(k_wih, (emb_dim, 4 * hid_dim), dtype=jnp.float32)
    b_ih = 0.1 * jax.random.normal(k_bih, (1, 4 * hid_dim), dtype=jnp.float32)
    b_hh = 0.1 * jax.random.normal(k_bhh, (1, 4 * hid_dim), dtype=jnp.float32)

    hidden, cell = encoder_forward(src, w_emb, b_emb, w_ih, b_ih, b_hh, hid_dim)
    jax.block_until_ready((hidden, cell))

    # Pure-JAX f32 reference check (kernel uses bf16 matmul inputs -> loose tol)
    emb = jnp.maximum(src @ w_emb + b_emb, 0.0)
    gates = emb @ w_ih + b_ih + b_hh
    i_g = jax.nn.sigmoid(gates[:, 0:hid_dim])
    g_g = jnp.tanh(gates[:, 2 * hid_dim:3 * hid_dim])
    o_g = jax.nn.sigmoid(gates[:, 3 * hid_dim:4 * hid_dim])
    c_ref = i_g * g_g
    h_ref = o_g * jnp.tanh(c_ref)

    assert hidden.shape == (1, batch, hid_dim) and cell.shape == (1, batch, hid_dim)
    assert jnp.allclose(hidden[0], h_ref, atol=2e-2), \
        f"hidden mismatch: {jnp.max(jnp.abs(hidden[0] - h_ref))}"
    assert jnp.allclose(cell[0], c_ref, atol=2e-2), \
        f"cell mismatch: {jnp.max(jnp.abs(cell[0] - c_ref))}"

    print("KERNEL_OK")
</pallas_src>

<mosaic_0001>
module attributes {stable_mosaic.version = 11 : i64} {
  func.func @encoder_kernel(%arg0: memref<2x8xbf16, #tpu.memory_space<vmem>>, %arg1: memref<8x32xbf16, #tpu.memory_space<vmem>>, %arg2: memref<1x32xf32, #tpu.memory_space<vmem>>, %arg3: memref<32x96xbf16, #tpu.memory_space<vmem>>, %arg4: memref<1x96xf32, #tpu.memory_space<vmem>>, %arg5: memref<2x64xf32, #tpu.memory_space<vmem>>) attributes {dimension_semantics = [], scalar_prefetch = 0 : i64, scratch_operands = 0 : i64, tpu.core_type = #tpu.core_type<tc>} {
    %c0 = arith.constant 0 : index
    %c0_0 = arith.constant 0 : index
    %0 = vector.load %arg0[%c0, %c0_0] : memref<2x8xbf16, #tpu.memory_space<vmem>>, vector<2x8xbf16>
    %c0_1 = arith.constant 0 : index
    %c0_2 = arith.constant 0 : index
    %1 = vector.load %arg1[%c0_1, %c0_2] : memref<8x32xbf16, #tpu.memory_space<vmem>>, vector<8x32xbf16>
    %cst = arith.constant dense<0.000000e+00> : vector<2x32xf32>
    %2 = tpu.matmul %0, %1, %cst {dimension_numbers = #tpu.dot_dimension_numbers<[1], [0], [0], [1], [0, 0, 1, 1], [], []>} : vector<2x8xbf16>, vector<8x32xbf16>, vector<2x32xf32> -> vector<2x32xf32>
    %c0_3 = arith.constant 0 : index
    %c0_4 = arith.constant 0 : index
    %3 = vector.load %arg2[%c0_3, %c0_4] : memref<1x32xf32, #tpu.memory_space<vmem>>, vector<1x32xf32>
    %4 = vector.broadcast %3 : vector<1x32xf32> to vector<2x32xf32>
    %5 = arith.addf %2, %4 : vector<2x32xf32>
    %cst_5 = arith.constant 0.000000e+00 : f32
    %6 = vector.broadcast %cst_5 : f32 to vector<2x32xf32>
    %7 = arith.maximumf %5, %6 : vector<2x32xf32>
    %8 = arith.truncf %7 : vector<2x32xf32> to vector<2x32xbf16>
    %c0_6 = arith.constant 0 : index
    %c0_7 = arith.constant 0 : index
    %9 = vector.load %arg3[%c0_6, %c0_7] : memref<32x96xbf16, #tpu.memory_space<vmem>>, vector<32x96xbf16>
    %cst_8 = arith.constant dense<0.000000e+00> : vector<2x96xf32>
    %10 = tpu.matmul %8, %9, %cst_8 {dimension_numbers = #tpu.dot_dimension_numbers<[1], [0], [0], [1], [0, 0, 1, 1], [], []>} : vector<2x32xbf16>, vector<32x96xbf16>, vector<2x96xf32> -> vector<2x96xf32>
    %c0_9 = arith.constant 0 : index
    %c0_10 = arith.constant 0 : index
    %11 = vector.load %arg4[%c0_9, %c0_10] : memref<1x96xf32, #tpu.memory_space<vmem>>, vector<1x96xf32>
    %12 = vector.broadcast %11 : vector<1x96xf32> to vector<2x96xf32>
    %13 = arith.addf %10, %12 : vector<2x96xf32>
    %14 = arith.negf %13 : vector<2x96xf32>
    %15 = math.exp %14 : vector<2x96xf32>
    %cst_11 = arith.constant 1.000000e+00 : f32
    %16 = vector.broadcast %cst_11 : f32 to vector<2x96xf32>
    %17 = arith.addf %16, %15 : vector<2x96xf32>
    %18 = arith.divf %16, %17 : vector<2x96xf32>
    %19 = math.tanh %13 : vector<2x96xf32>
    %20 = vector.extract_strided_slice %18 {offsets = [0, 0], sizes = [2, 32], strides = [1, 1]} : vector<2x96xf32> to vector<2x32xf32>
    %21 = vector.extract_strided_slice %19 {offsets = [0, 32], sizes = [2, 32], strides = [1, 1]} : vector<2x96xf32> to vector<2x32xf32>
    %22 = vector.extract_strided_slice %18 {offsets = [0, 64], sizes = [2, 32], strides = [1, 1]} : vector<2x96xf32> to vector<2x32xf32>
    %23 = arith.mulf %20, %21 : vector<2x32xf32>
    %24 = math.tanh %23 : vector<2x32xf32>
    %25 = arith.mulf %22, %24 : vector<2x32xf32>
    %26 = tpu.concatenate %25, %23 in 1 : vector<2x32xf32>, vector<2x32xf32> -> vector<2x64xf32>
    %c0_12 = arith.constant 0 : index
    %c0_13 = arith.constant 0 : index
    %27 = vector.load %arg5[%c0_12, %c0_13] : memref<2x64xf32, #tpu.memory_space<vmem>>, vector<2x64xf32>
    tpu.vector_store %arg5[%c0_12, %c0_13], %26 {strides = array<i32>} : memref<2x64xf32, #tpu.memory_space<vmem>>, vector<2x64xf32>,
    return
  }
}

</mosaic_0001>

<llo_original>
// kernel: tpu_custom_call.1
$region0: #{tpu_custom_call.1}
  #allocation0 [shape = 'u32[]', space=smem, size = 0x4, offset = 0x4, fixed_abs, tag = 'smem constant byte address 0x4 - core index']
  #allocation1 [shape = 'u32[144,128]{1,0:T(1,128)}', space=vmem, size = 0x12000, scoped, tag = 'internal scratch']
  %s0 = inlined_call_operand.hbm [shape: bf16[2,8], index: 0, kind: input, shape index: {}]
  %s1 = inlined_call_operand.hbm [shape: bf16[8,32], index: 1, kind: input, shape index: {}]
  %s2 = inlined_call_operand.vmem [shape: f32[1,32], index: 2, kind: input, shape index: {}]
  %s3 = inlined_call_operand.hbm [shape: bf16[32,96], index: 3, kind: input, shape index: {}]
  %s4 = inlined_call_operand.vmem [shape: f32[1,96], index: 4, kind: input, shape index: {}]
  %s5 = inlined_call_operand.hbm [shape: f32[2,64], index: 5, kind: output, shape index: {}]
  %s6 = sld [smem:[#allocation0]]
  $region42: #{tpu_custom_call.1} parent=0
    _
  %s8 = ssub.s32 1, %s6
  %s9 = scalar_select 0, %s8, %s6
  $region1: #{tpu_custom_call.1} parent=0
    #allocation2 [shape = 'u8[512]{0}', space=vmem, size = 0x400, scoped, tag = 'input window, operand 0, single buffered']
    #allocation3 [shape = 's32[1]{0}', space=sflag, size = 0x4, scoped, tag = 'scoped memory for tpu_custom_call.1']
    #allocation4 [shape = 's32[1]{0}', space=sflag, size = 0x4, scoped, tag = 'scoped memory for tpu_custom_call.1']
    #allocation5 [shape = 'u8[2048]{0}', space=vmem, size = 0x800, scoped, tag = 'input window, operand 1, single buffered']
    #allocation6 [shape = 's32[1]{0}', space=sflag, size = 0x4, scoped, tag = 'scoped memory for tpu_custom_call.1']
    #allocation7 [shape = 'u8[8192]{0}', space=vmem, size = 0x2000, scoped, tag = 'input window, operand 3, single buffered']
    #allocation8 [shape = 'u8[1024]{0}', space=vmem, size = 0x400, scoped, tag = 'output window, operand 0, single buffered']
    %10 = vsyncpa [#allocation3], 0
    %11 = vsyncpa [#allocation6], 0
    %12 = vsyncpa [#allocation4], 0
    // Predicated region
    $region2: #{tpu_custom_call.1} parent=1 // pred_check
      _
    $region3: #{tpu_custom_call.1} parent=1 // pred_check_branch
      %14 = sbr.rel (0) target = $region5
    $region4: #{tpu_custom_call.1} parent=1 // pred_region
      %s16 = ssub.s32 16, 16
      %17 = vsyncadd [#allocation3], %s16
      %s19 = sshll.u32 [#allocation2], 4
      %s20 = int_to_ptr.vmem [resolvable:$true] %s19
      %22 = dma.hbm_to_vmem [thread:$0]  %s0, 16, %s20, [#allocation3]
    $region5: #{tpu_custom_call.1} parent=1 // pred_fallthru
      _
    // Predicated region
    $region6: #{tpu_custom_call.1} parent=1 // pred_check
      _
    $region7: #{tpu_custom_call.1} parent=1 // pred_check_branch
      %24 = sbr.rel (0) target = $region9
    $region8: #{tpu_custom_call.1} parent=1 // pred_region
      %s26 = ssub.s32 64, 64
      %27 = vsyncadd [#allocation6], %s26
      %s29 = sshll.u32 [#allocation5], 4
      %s30 = int_to_ptr.vmem [resolvable:$true] %s29
      %32 = dma.hbm_to_vmem [thread:$0]  %s1, 64, %s30, [#allocation6]
    $region9: #{tpu_custom_call.1} parent=1 // pred_fallthru
      _
    // Predicated region
    $region10: #{tpu_custom_call.1} parent=1 // pred_check
      _
    $region11: #{tpu_custom_call.1} parent=1 // pred_check_branch
      %34 = sbr.rel (0) target = $region13
    $region12: #{tpu_custom_call.1} parent=1 // pred_region
      _
    $region13: #{tpu_custom_call.1} parent=1 // pred_fallthru
      _
    // Predicated region
    $region14: #{tpu_custom_call.1} parent=1 // pred_check
      _
    $region15: #{tpu_custom_call.1} parent=1 // pred_check_branch
      %36 = sbr.rel (0) target = $region17
    $region16: #{tpu_custom_call.1} parent=1 // pred_region
      %s38 = ssub.s32 256, 256
      %39 = vsyncadd [#allocation6], %s38
      %s40 = sshll.u32 [#allocation7], 4
      %s41 = int_to_ptr.vmem [resolvable:$true] %s40
      %46 = dma.hbm_to_vmem [thread:$0]  %s3, 256, %s41, [#allocation6], 64, 64, 4
    $region17: #{tpu_custom_call.1} parent=1 // pred_fallthru
      _
    // Predicated region
    $region18: #{tpu_custom_call.1} parent=1 // pred_check
      _
    $region19: #{tpu_custom_call.1} parent=1 // pred_check_branch
      %48 = sbr.rel (0) target = $region21
    $region20: #{tpu_custom_call.1} parent=1 // pred_region
      _
    $region21: #{tpu_custom_call.1} parent=1 // pred_fallthru
      _
    // Predicated region
    $region22: #{tpu_custom_call.1} parent=1 // pred_check
      _
    $region23: #{tpu_custom_call.1} parent=1 // pred_check_branch
      %50 = sbr.rel (0) target = $region25
    $region24: #{tpu_custom_call.1} parent=1 // pred_region
      %51 = dma.done [#allocation3], 16
    $region25: #{tpu_custom_call.1} parent=1 // pred_fallthru
      _
    // Predicated region
    $region26: #{tpu_custom_call.1} parent=1 // pred_check
      _
    $region27: #{tpu_custom_call.1} parent=1 // pred_check_branch
      %53 = sbr.rel (0) target = $region29
    $region28: #{tpu_custom_call.1} parent=1 // pred_region
      %54 = dma.done [#allocation6], 64
    $region29: #{tpu_custom_call.1} parent=1 // pred_fallthru
      _
    // Predicated region
    $region30: #{tpu_custom_call.1} parent=1 // pred_check
      _
    $region31: #{tpu_custom_call.1} parent=1 // pred_check_branch
      %56 = sbr.rel (0) target = $region33
    $region32: #{tpu_custom_call.1} parent=1 // pred_region
      %57 = dma.done [#allocation6], 256
    $region33: #{tpu_custom_call.1} parent=1 // pred_fallthru
      _
    %v59 = vld [vmem:[#allocation2] sm:$0x1]
    %v60 = vld [vmem:[#allocation5] sm:$0xf]
    %v61 = vld [vmem:[%s2] sm:$0x1]
    %v63 = vlaneseq
    %v64 = vshrl.u32 %v63, 7
    %v65 = vsub.s32 0, %v64
    %v66 = vrot.slane %v61, %v65
    %vm68 = vcmask 64512
    %v70 = vsel %vm68, %v59, 0
    %vm72 = vcmask 1043456
    %v74 = vsel %vm72, %v60, 0
    %76 = vmatprep.subr.bf16.mxu0 0
    %77 = vmatpush1.bf16.msra.mxu0 %v74
    %78 = vmatprep.subr.bf16.mxu0 0
    %79 = vmatpush1.bf16.msra.mxu0 0
    %80 = vmatprep.subr.bf16.mxu0 0
    %81 = vmatpush1.bf16.msra.mxu0 0
    %82 = vmatprep.subr.bf16.mxu0 0
    %83 = vmatpush1.bf16.msra.mxu0 0
    %84 = vmatprep.subr.bf16.mxu0 0
    %85 = vmatpush1.bf16.msra.mxu0 0
    %86 = vmatprep.subr.bf16.mxu0 0
    %87 = vmatpush1.bf16.msra.mxu0 0
    %88 = vmatprep.subr.bf16.mxu0 0
    %89 = vmatpush1.bf16.msra.mxu0 0
    %90 = vmatprep.subr.bf16.mxu0 0
    %91 = vmatpush1.bf16.msra.mxu0 0
    %92 = vmatprep.subr.bf16.mxu0 0
    %93 = vmatpush1.bf16.msra.mxu0 0
    %94 = vmatprep.subr.bf16.mxu0 0
    %95 = vmatpush1.bf16.msra.mxu0 0
    %96 = vmatprep.subr.bf16.mxu0 0
    %97 = vmatpush1.bf16.msra.mxu0 0
    %98 = vmatprep.subr.bf16.mxu0 0
    %99 = vmatpush1.bf16.msra.mxu0 0
    %100 = vmatprep.subr.bf16.mxu0 0
    %101 = vmatpush1.bf16.msra.mxu0 0
    %102 = vmatprep.subr.bf16.mxu0 0
    %103 = vmatpush1.bf16.msra.mxu0 0
    %104 = vmatprep.subr.bf16.mxu0 0
    %105 = vmatpush1.bf16.msra.mxu0 0
    %106 = vmatprep.subr.bf16.mxu0 0
    %107 = vmatpush1.bf16.msra.mxu0 0
    %108 = vmatprep.mubr.bf16.mxu0 0
    %109 = vmatmul.mubr.bf16.gmra.mrb[0].mxu0 %v70
    %v110 = vpop.f32.mrb[0].mxu0
    %v111 = vadd.f32 %v66, %v110
    %v112 = vpop.f32.mrb[0].mxu0
    %v113 = vpop.f32.mrb[0].mxu0
    %v114 = vpop.f32.mrb[0].mxu0
    %115 = vdwg.mxu0
    %v116 = vmax.f32 %v111, 0.0
    %v117 = vpack.c.bf16 %v116, %v116
    %v118 = vld [vmem:[#allocation7] sm:$0xf]
    %v119 = vld [vmem:[#allocation7 + $0x4] sm:$0xf]
    %v120 = vld [vmem:[#allocation7 + $0x8] sm:$0xf]
    %v121 = vld [vmem:[#allocation7 + $0xc] sm:$0xf]
    %v122 = vld [vmem:[%s4] sm:$0x1]
    %v124 = vlaneseq
    %v125 = vshrl.u32 %v124, 7
    %v126 = vsub.s32 0, %v125
    %v127 = vrot.slane %v122, %v126
    %v133 = vunpack.c.l.b16 %v118
    %v134 = vunpack.c.l.b16 %v119
    %v135 = vunpack.c.l.b16 %v120
    %v136 = vunpack.c.l.b16 %v121
    %v137 = vpack.c.b16 %v134, %v133
    %v138 = vpack.c.b16 %v136, %v135
    %vm141 = vcmask 261120
    %v143 = vsel %vm141, %v117, 0
    %145 = vmatprep.subr.bf16.mxu0 0
    %146 = vmatpush1.bf16.msra.mxu0 %v137
    %147 = vmatprep.subr.bf16.mxu0 0
    %148 = vmatpush1.bf16.msra.mxu0 %v138
    %149 = vmatprep.subr.bf16.mxu0 0
    %150 = vmatpush1.bf16.msra.mxu0 0
    %151 = vmatprep.subr.bf16.mxu0 0
    %152 = vmatpush1.bf16.msra.mxu0 0
    %153 = vmatprep.subr.bf16.mxu0 0
    %154 = vmatpush1.bf16.msra.mxu0 0
    %155 = vmatprep.subr.bf16.mxu0 0
    %156 = vmatpush1.bf16.msra.mxu0 0
    %157 = vmatprep.subr.bf16.mxu0 0
    %158 = vmatpush1.bf16.msra.mxu0 0
    %159 = vmatprep.subr.bf16.mxu0 0
    %160 = vmatpush1.bf16.msra.mxu0 0
    %161 = vmatprep.subr.bf16.mxu0 0
    %162 = vmatpush1.bf16.msra.mxu0 0
    %163 = vmatprep.subr.bf16.mxu0 0
    %164 = vmatpush1.bf16.msra.mxu0 0
    %165 = vmatprep.subr.bf16.mxu0 0
    %166 = vmatpush1.bf16.msra.mxu0 0
    %167 = vmatprep.subr.bf16.mxu0 0
    %168 = vmatpush1.bf16.msra.mxu0 0
    %169 = vmatprep.subr.bf16.mxu0 0
    %170 = vmatpush1.bf16.msra.mxu0 0
    %171 = vmatprep.subr.bf16.mxu0 0
    %172 = vmatpush1.bf16.msra.mxu0 0
    %173 = vmatprep.subr.bf16.mxu0 0
    %174 = vmatpush1.bf16.msra.mxu0 0
    %175 = vmatprep.subr.bf16.mxu0 0
    %176 = vmatpush1.bf16.msra.mxu0 0
    %177 = vmatprep.mubr.bf16.mxu0 0
    %178 = vmatmul.mubr.bf16.gmra.mrb[0].mxu0 %v143
    %v179 = vpop.f32.mrb[0].mxu0
    %v180 = vadd.f32 %v127, %v179
    %v181 = vpop.f32.mrb[0].mxu0
    %v182 = vpop.f32.mrb[0].mxu0
    %v183 = vpop.f32.mrb[0].mxu0
    %184 = vdwg.mxu0
    %v185 = vxor.u32 %v180, 2147483648
    %v186 = vmul.f32 %v185, 1.442695
    %v187 = vpow.pop %v186
    %v188 = vadd.f32 %v187, 1.0
    %v189 = vrcp.pop %v188
    %v190 = vmul.f32 1.0, %v189
    %v191 = vtanh.pop %v180
    %193 = vrot.lane.b32.xlu0 %v191, 96
    %v194 = vpop.permute.xlu0 %193
    %v196 = vmul.f32 %v190, %v194
    %v197 = vtanh.pop %v196
    %199 = vrot.lane.b32.xlu0 %v197, 64
    %v200 = vpop.permute.xlu0 %199
    %v202 = vmul.f32 %v190, %v200
    %204 = vrot.lane.b32.xlu0 %v202, 64
    %v205 = vpop.permute.xlu0 %204
    %208 = vrot.lane.b32.xlu0 %v196, 32
    %v209 = vpop.permute.xlu0 %208
    %v211 = vsel %vm141, %v205, %v209
    %vm212 = vcmask 517120
    %213 = vst.msk [vmem:[#allocation8] sm:$0x3] %vm212, %v211
    // Predicated region
    $region34: #{tpu_custom_call.1} parent=1 // pred_check
      _
    $region35: #{tpu_custom_call.1} parent=1 // pred_check_branch
      %215 = sbr.rel (0) target = $region37
    $region36: #{tpu_custom_call.1} parent=1 // pred_region
      %s217 = ssub.s32 32, 32
      %218 = vsyncadd [#allocation4], %s217
      %s220 = sshll.u32 [#allocation8], 4
      %s221 = int_to_ptr.vmem [resolvable:$true] %s220
      %223 = dma.vmem_to_hbm [thread:$0]  %s221, 32, %s5, [#allocation4]
    $region37: #{tpu_custom_call.1} parent=1 // pred_fallthru
      _
    // Predicated region
    $region38: #{tpu_custom_call.1} parent=1 // pred_check
      _
    $region39: #{tpu_custom_call.1} parent=1 // pred_check_branch
      %225 = sbr.rel (0) target = $region41
    $region40: #{tpu_custom_call.1} parent=1 // pred_region
      %226 = dma.done [#allocation4], 32
    $region41: #{tpu_custom_call.1} parent=1 // pred_fallthru
      _
    %227 = vsyncpa [#allocation3], 1
    %228 = vsyncpa [#allocation6], 1
    %229 = vsyncpa [#allocation4], 1

</llo_original>
